<compile_context>
chip_gen: v7x
topology: tpu7x:2x2x1
jax: 0.10.0
libtpu: 0.0.40
codegen_flags: <defaults>
</compile_context>

<pallas_src>
import functools
import numpy as np
import jax
import jax.numpy as jnp
from jax import lax
from jax.experimental import pallas as pl
from jax.experimental.pallas import tpu as pltpu

BN_EPS = 1e-5
DICE_C = 1e-5
VMEM_LIMIT = 48 * 1024 * 1024


def _round_up(x, m):
    return (x + m - 1) // m * m


def _m_tiles(M):
    Mp0 = _round_up(M, 16)
    if Mp0 <= 256:
        return Mp0, Mp0
    return _round_up(M, 256), 256


def _mm_kn_tiles(K, N):
    # K: single full-K block when small (avoids zero K-tiles), else 128-mult tiles.
    if K <= 1152:
        Kp = _round_up(K, 16)
        TK = Kp
    else:
        Kp = _round_up(K, 128)
        TK = 128
        for cand in (512, 384, 256, 128):
            if Kp % cand == 0:
                TK = cand
                break
    Np = _round_up(N, 128)
    if Np <= 512:
        TN = Np
    else:
        TN = 128
        for cand in (512, 384, 256, 128):
            if Np % cand == 0:
                TN = cand
                break
    return Kp, TK, Np, TN


# ---------------------------------------------------------------------------
# Pallas kernel 1: tiled matmul (bf16 operands, f32 acc) fused with bias + act
# ---------------------------------------------------------------------------
def _mm_kernel(a_ref, b_ref, c_ref, o_ref, acc_ref, *, act):
    k = pl.program_id(2)

    @pl.when(k == 0)
    def _():
        acc_ref[...] = jnp.zeros_like(acc_ref)

    acc_ref[...] += jnp.dot(a_ref[...], b_ref[...],
                            preferred_element_type=jnp.float32)

    @pl.when(k == pl.num_programs(2) - 1)
    def _():
        y = acc_ref[...] + c_ref[...]
        if act == "relu":
            y = jnp.maximum(y, 0.0)
        elif act == "sigmoid":
            y = jax.nn.sigmoid(y)
        o_ref[...] = y.astype(o_ref.dtype)


@functools.lru_cache(maxsize=None)
def _build_mm(Mp, Kp, Np, TM, TK, TN, act, out_dtype):
    kern = functools.partial(_mm_kernel, act=act)
    call = pl.pallas_call(
        kern,
        out_shape=jax.ShapeDtypeStruct((Mp, Np), jnp.dtype(out_dtype)),
        grid_spec=pltpu.PrefetchScalarGridSpec(
            num_scalar_prefetch=0,
            grid=(Mp // TM, Np // TN, Kp // TK),
            in_specs=[
                pl.BlockSpec((TM, TK), lambda i, j, k: (i, k)),
                pl.BlockSpec((TK, TN), lambda i, j, k: (k, j)),
                pl.BlockSpec((1, TN), lambda i, j, k: (0, j)),
            ],
            out_specs=pl.BlockSpec((TM, TN), lambda i, j, k: (i, j)),
            scratch_shapes=[pltpu.VMEM((TM, TN), jnp.float32)],
        ),
        compiler_params=pltpu.CompilerParams(
            dimension_semantics=("parallel", "parallel", "arbitrary"),
            vmem_limit_bytes=VMEM_LIMIT),
    )
    return jax.jit(call)


def matmul_bias(a, layer, act="relu", out_dtype=jnp.bfloat16):
    M, K = a.shape
    assert K == layer["K"]
    Kp, Np = layer["w"].shape
    TK, TN = layer["TK"], layer["TN"]
    Mp, TM = _m_tiles(M)
    a_p = a.astype(jnp.bfloat16)
    if (Mp, Kp) != (M, K):
        a_p = jnp.pad(a_p, ((0, Mp - M), (0, Kp - K)))
    out = _build_mm(Mp, Kp, Np, TM, TK, TN, act,
                    jnp.dtype(out_dtype).name)(a_p, layer["w"], layer["b"])
    return out[:M, :layer["N"]]


# ---------------------------------------------------------------------------
# Pallas kernel 2: grouped 3x3 conv (VPU, groups on the lane axis)
#   taps:    (P, cin_g*9, M, G)   bf16
#   weights: (P, cin_g*9, cout_g, G) f32 (BN scale pre-folded)
#   out:     (P, cout_g, M, G)    bf16 (ReLU applied)
# ---------------------------------------------------------------------------
def _grouped_kernel(t_ref, w_ref, o_ref, *, k9, cout_g):
    tm, g = t_ref.shape[1], t_ref.shape[2]

    def body(k, accs):
        x_k = t_ref[k].astype(jnp.float32)      # (TMg, G)
        w_k = w_ref[k]                          # (cout_g, G)
        return tuple(accs[o] + x_k * w_k[o:o + 1, :] for o in range(cout_g))

    init = tuple(jnp.zeros((tm, g), jnp.float32) for _ in range(cout_g))
    accs = lax.fori_loop(0, k9, body, init,
                         unroll=True if k9 * cout_g <= 40 else None)
    for o in range(cout_g):
        o_ref[o] = jnp.maximum(accs[o], 0.0).astype(o_ref.dtype)


@functools.lru_cache(maxsize=None)
def _build_grouped(P_, K9, Mp, TMg, G, cout_g):
    kern = functools.partial(_grouped_kernel, k9=K9, cout_g=cout_g)
    call = pl.pallas_call(
        kern,
        out_shape=jax.ShapeDtypeStruct((P_, cout_g, Mp, G), jnp.bfloat16),
        grid_spec=pltpu.PrefetchScalarGridSpec(
            num_scalar_prefetch=0,
            grid=(P_, Mp // TMg),
            in_specs=[
                pl.BlockSpec((None, K9, TMg, G), lambda p, m: (p, 0, m, 0)),
                pl.BlockSpec((None, K9, cout_g, G), lambda p, m: (p, 0, 0, 0)),
            ],
            out_specs=pl.BlockSpec((None, cout_g, TMg, G),
                                   lambda p, m: (p, 0, m, 0)),
        ),
        compiler_params=pltpu.CompilerParams(
            dimension_semantics=("parallel", "parallel"),
            vmem_limit_bytes=VMEM_LIMIT),
    )
    return jax.jit(call)


def _grouped_taps(x_fact):
    # x_fact: (P, cin_g, B, H, W, G) -> (P, cin_g*9, B*H*W, G), k = c*9 + dy*3 + dx
    P_, cg, B, H, W, G = x_fact.shape
    xp = jnp.pad(x_fact.astype(jnp.bfloat16),
                 ((0, 0), (0, 0), (0, 0), (1, 1), (1, 1), (0, 0)))
    taps = []
    for dy in range(3):
        for dx in range(3):
            taps.append(xp[:, :, :, dy:dy + H, dx:dx + W, :])
    t = jnp.stack(taps, axis=2)                 # (P, cg, 9, B, H, W, G)
    return t.reshape(P_, cg * 9, B * H * W, G)


def grouped_conv3x3(x_fact, w_fact):
    P_, cg, B, H, W, G = x_fact.shape
    K9, cout_g = w_fact.shape[1], w_fact.shape[2]
    M = B * H * W
    taps = _grouped_taps(x_fact)                # (P, K9, M, G)
    Mp, TMg = _m_tiles(M)
    if Mp != M:
        taps = jnp.pad(taps, ((0, 0), (0, 0), (0, Mp - M), (0, 0)))
    out = _build_grouped(P_, K9, Mp, TMg, G, cout_g)(taps, w_fact)
    return out[:, :, :M, :].reshape(P_, cout_g, B, H, W, G)


def grouped_conv_nhwc(x, layer):
    # NHWC in / NHWC out, PyTorch grouping (contiguous channel blocks).
    B, H, W, C = x.shape
    cg, og, G = layer["cin_g"], layer["cout_g"], layer["G"]
    xf = jnp.transpose(x.reshape(B, H, W, G, cg), (4, 0, 1, 2, 3))[None]
    out = grouped_conv3x3(xf, layer["w"][None])         # (1, og, B, H, W, G)
    out = jnp.transpose(out[0], (1, 2, 3, 4, 0))        # (B, H, W, G, og)
    return out.reshape(B, H, W, G * og)


# ---------------------------------------------------------------------------
# Pallas kernel 3: fused attention weighting + channel means + dice weight
#                  + global average pool (chunked over HW for VMEM safety)
# ---------------------------------------------------------------------------
def _att_fuse_kernel(x_ref, a_ref, b_ref, x2p_ref, xsp_ref, d1_ref, d2_ref,
                     e_ref, *, hw, c):
    h = pl.program_id(0)
    x = x_ref[...].astype(jnp.float32)
    a = a_ref[...].astype(jnp.float32)
    b = b_ref[...].astype(jnp.float32)
    inv_hw = 1.0 / hw
    inv_c = 1.0 / c

    @pl.when(h == 0)
    def _():
        x2p_ref[...] = jnp.zeros_like(x2p_ref)
        xsp_ref[...] = jnp.zeros_like(xsp_ref)
        e_ref[...] = jnp.zeros_like(e_ref)

    x2p_ref[...] += jnp.sum(x * a, axis=1) * inv_hw     # pool2(x1*att)
    xsp_ref[...] += jnp.sum(x * b, axis=1) * inv_hw     # pool2(x1*att2)
    d1 = jnp.sum(a, axis=2) * inv_c                     # mean over channels
    d2 = jnp.sum(b, axis=2) * inv_c
    ew = (2.0 * d1 * d2 + DICE_C) / (d1 * d1 + d2 * d2 + DICE_C)
    d1_ref[...] = d1
    d2_ref[...] = d2
    e_ref[...] += jnp.sum(ew, axis=1, keepdims=True) * inv_hw


@functools.lru_cache(maxsize=None)
def _build_fuse(B, HW, C, thw):
    kern = functools.partial(_att_fuse_kernel, hw=HW, c=C)
    call = pl.pallas_call(
        kern,
        out_shape=(
            jax.ShapeDtypeStruct((B, C), jnp.float32),
            jax.ShapeDtypeStruct((B, C), jnp.float32),
            jax.ShapeDtypeStruct((B, HW), jnp.float32),
            jax.ShapeDtypeStruct((B, HW), jnp.float32),
            jax.ShapeDtypeStruct((B, 1), jnp.float32),
        ),
        grid_spec=pltpu.PrefetchScalarGridSpec(
            num_scalar_prefetch=0,
            grid=(HW // thw,),
            in_specs=[pl.BlockSpec((B, thw, C), lambda h: (0, h, 0))] * 3,
            out_specs=[
                pl.BlockSpec((B, C), lambda h: (0, 0)),
                pl.BlockSpec((B, C), lambda h: (0, 0)),
                pl.BlockSpec((B, thw), lambda h: (0, h)),
                pl.BlockSpec((B, thw), lambda h: (0, h)),
                pl.BlockSpec((B, 1), lambda h: (0, 0)),
            ],
        ),
        compiler_params=pltpu.CompilerParams(
            dimension_semantics=("arbitrary",),
            vmem_limit_bytes=VMEM_LIMIT),
    )
    return jax.jit(call)


def attention_fuse(x1, att, att2):
    B, H, W, C = x1.shape
    HW = H * W
    thw = HW
    if HW > 512 and HW % 128 == 0:
        for cand in (512, 384, 256, 128):
            if HW % cand == 0:
                thw = cand
                break
    xs = x1.reshape(B, HW, C)
    a_ = att.reshape(B, HW, C)
    b_ = att2.reshape(B, HW, C)
    x2p, xsp, d1, d2, e = _build_fuse(B, HW, C, thw)(xs, a_, b_)
    return x2p, xsp, d1.reshape(B, H, W), d2.reshape(B, H, W), e.reshape(B)


# ---------------------------------------------------------------------------
# Pallas kernel 4: both dense heads (Q and S) fused, parallel over heads
# ---------------------------------------------------------------------------
def _dense_pair_kernel(x_ref, w1_ref, b1_ref, w2_ref, b2_ref, w3_ref, b3_ref,
                       o_ref):
    h = jnp.dot(x_ref[...], w1_ref[...],
                preferred_element_type=jnp.float32) + b1_ref[...]
    h = jnp.maximum(h, 0.0).astype(jnp.bfloat16)
    h = jnp.dot(h, w2_ref[...],
                preferred_element_type=jnp.float32) + b2_ref[...]
    h = jnp.maximum(h, 0.0).astype(jnp.bfloat16)
    y = jnp.dot(h, w3_ref[...],
                preferred_element_type=jnp.float32) + b3_ref[...]
    o_ref[...] = jax.nn.sigmoid(y)


@functools.lru_cache(maxsize=None)
def _build_dense_pair(B, d_in, d_h1, d_h2, d_out):
    call = pl.pallas_call(
        _dense_pair_kernel,
        out_shape=jax.ShapeDtypeStruct((2, B, d_out), jnp.float32),
        grid_spec=pltpu.PrefetchScalarGridSpec(
            num_scalar_prefetch=0,
            grid=(2,),
            in_specs=[
                pl.BlockSpec((None, B, d_in), lambda p: (p, 0, 0)),
                pl.BlockSpec((None, d_in, d_h1), lambda p: (p, 0, 0)),
                pl.BlockSpec((None, 1, d_h1), lambda p: (p, 0, 0)),
                pl.BlockSpec((None, d_h1, d_h2), lambda p: (p, 0, 0)),
                pl.BlockSpec((None, 1, d_h2), lambda p: (p, 0, 0)),
                pl.BlockSpec((None, d_h2, d_out), lambda p: (p, 0, 0)),
                pl.BlockSpec((None, 1, d_out), lambda p: (p, 0, 0)),
            ],
            out_specs=pl.BlockSpec((None, B, d_out), lambda p: (p, 0, 0)),
        ),
        compiler_params=pltpu.CompilerParams(
            dimension_semantics=("parallel",),
            vmem_limit_bytes=VMEM_LIMIT),
    )
    return jax.jit(call)


def dense_pair(x2p, xsp, heads):
    # Dropout is eval-mode identity; BatchNorm1d folded into the weights.
    B = x2p.shape[0]
    x = jnp.stack([x2p, xsp]).astype(jnp.bfloat16)          # (2, B, 512)
    out = _build_dense_pair(B, 512, 256, 128, 128)(
        x, heads["w1"], heads["b1"], heads["w2"], heads["b2"],
        heads["w3"], heads["b3"])
    return out[0, :, :heads["n_q"]], out[1, :, :heads["n_s"]]


# ---------------------------------------------------------------------------
# NHWC glue
# ---------------------------------------------------------------------------
def _im2col_nhwc(x, kh, kw, stride, pad):
    B, H, W, C = x.shape
    Ho = (H + 2 * pad - kh) // stride + 1
    Wo = (W + 2 * pad - kw) // stride + 1
    if kh == 1 and kw == 1 and stride == 1 and pad == 0:
        return x.reshape(B * H * W, C), B, Ho, Wo        # 1x1: pure reshape
    xp = jnp.pad(x, ((0, 0), (pad, pad), (pad, pad), (0, 0)))
    cols = []
    for dy in range(kh):
        for dx in range(kw):
            cols.append(xp[:, dy:dy + stride * Ho:stride,
                           dx:dx + stride * Wo:stride, :])
    p = jnp.stack(cols, axis=3)                          # (B, Ho, Wo, kh*kw, C)
    return p.reshape(B * Ho * Wo, kh * kw * C), B, Ho, Wo


def conv_apply(x, layer, act="relu"):
    A, Bsz, Ho, Wo = _im2col_nhwc(x, layer["kh"], layer["kw"], layer["stride"],
                                  layer["pad"])
    y = matmul_bias(A, layer, act)
    return y.reshape(Bsz, Ho, Wo, layer["N"])


def maxpool3x3s2p1(x):
    neg = jnp.asarray(-jnp.inf, x.dtype)
    return lax.reduce_window(
        x, neg, lax.max,
        window_dimensions=(1, 3, 3, 1),
        window_strides=(1, 2, 2, 1),
        padding=((0, 0), (1, 1), (1, 1), (0, 0)))


def chunk_cat(x, hb, wb):
    # torch: chunk along H into hb, then each along W into wb, cat on channels
    B, H, W, C = x.shape
    xr = x.reshape(B, hb, H // hb, wb, W // wb, C)
    xr = jnp.transpose(xr, (0, 2, 4, 1, 3, 5))
    return xr.reshape(B, H // hb, W // wb, hb * wb * C)


# ---------------------------------------------------------------------------
# Parameter construction (deterministic; BN folded, weights bf16, pre-padded)
# ---------------------------------------------------------------------------
class PInit:
    def __init__(self, seed=0):
        self.rng = np.random.default_rng(seed)

    def _bn_scale(self, cout, bn):
        if bn:
            return np.full((cout,), 1.0 / np.sqrt(1.0 + BN_EPS), np.float32)
        return np.ones((cout,), np.float32)

    def conv(self, cin, cout, kh, kw=None, stride=1, pad=0, bias=False,
             bn=True):
        kw = kh if kw is None else kw
        fan_in = cin * kh * kw
        W = self.rng.normal(0.0, np.sqrt(2.0 / fan_in),
                            size=(cout, cin, kh, kw)).astype(np.float32)
        conv_b = (self.rng.normal(0.0, 0.01, size=(cout,)).astype(np.float32)
                  if bias else np.zeros((cout,), np.float32))
        s = self._bn_scale(cout, bn)
        # im2col column order is (dy, dx, c); fold BN scale into the columns.
        Wm = np.transpose(W, (2, 3, 1, 0)).reshape(kh * kw * cin, cout)
        Wm = Wm * s[None, :]
        b = s * conv_b
        K, N = Wm.shape
        Kp, TK, Np, TN = _mm_kn_tiles(K, N)
        Wp = np.zeros((Kp, Np), np.float32)
        Wp[:K, :N] = Wm
        bp = np.zeros((1, Np), np.float32)
        bp[0, :N] = b
        return dict(w=jnp.asarray(Wp, jnp.bfloat16), b=jnp.asarray(bp),
                    K=K, N=N, TK=TK, TN=TN, kh=kh, kw=kw, stride=stride,
                    pad=pad)

    def grouped_conv(self, cin, cout, groups, bn=True):
        cg, og, G = cin // groups, cout // groups, groups
        fan_in = cg * 9
        W = self.rng.normal(0.0, np.sqrt(2.0 / fan_in),
                            size=(cout, cg, 3, 3)).astype(np.float32)
        s = self._bn_scale(cout, bn)
        W = W * s[:, None, None, None]
        # factored layout: w[c*9 + dy*3 + dx, o, g] = W[g*og + o, c, dy, dx]
        Wr = W.reshape(G, og, cg, 3, 3)
        wf = np.transpose(Wr, (2, 3, 4, 1, 0)).reshape(cg * 9, og, G)
        return dict(w=jnp.asarray(wf), cin_g=cg, cout_g=og, G=G)

    def linear(self, cin, cout, bn=False):
        W = self.rng.normal(0.0, np.sqrt(2.0 / cin),
                            size=(cout, cin)).astype(np.float32)
        b = self.rng.normal(0.0, 0.01, size=(cout,)).astype(np.float32)
        s = self._bn_scale(cout, bn)
        return dict(Wm=np.ascontiguousarray(W.T) * s[None, :], b=s * b)


def make_bottleneck(p, inplanes, planes, stride=1, downsample=False):
    return dict(
        conv1=p.conv(inplanes, planes, 1),
        conv2=p.conv(planes, planes, 3, stride=stride, pad=1),
        conv3=p.conv(planes, planes * 4, 1),
        downsample=(p.conv(inplanes, planes * 4, 1, stride=stride)
                    if downsample else None),
    )


def make_resnet50(p):
    layers_cfg = [(64, 3, 1), (128, 4, 2), (256, 6, 2), (512, 3, 2)]
    net = dict(conv1=p.conv(3, 64, 7, stride=2, pad=3), layers=[])
    inplanes = 64
    for planes, blocks, stride in layers_cfg:
        blist = []
        ds = (stride != 1 or inplanes != planes * 4)
        blist.append(make_bottleneck(p, inplanes, planes, stride, ds))
        inplanes = planes * 4
        for _ in range(1, blocks):
            blist.append(make_bottleneck(p, inplanes, planes, 1, False))
        net["layers"].append(blist)
    return net


def _make_heads(p):
    def head(n_out):
        l1 = p.linear(512, 256, bn=True)
        l2 = p.linear(256, 128, bn=True)
        l3 = p.linear(128, n_out, bn=False)
        w3 = np.zeros((128, 128), np.float32)
        w3[:, :n_out] = l3["Wm"]
        b3 = np.zeros((1, 128), np.float32)
        b3[0, :n_out] = l3["b"]
        return l1, l2, w3, b3

    hq, hs = head(1), head(101)
    return dict(
        w1=jnp.asarray(np.stack([hq[0]["Wm"], hs[0]["Wm"]]), jnp.bfloat16),
        b1=jnp.asarray(np.stack([hq[0]["b"][None, :], hs[0]["b"][None, :]])),
        w2=jnp.asarray(np.stack([hq[1]["Wm"], hs[1]["Wm"]]), jnp.bfloat16),
        b2=jnp.asarray(np.stack([hq[1]["b"][None, :], hs[1]["b"][None, :]])),
        w3=jnp.asarray(np.stack([hq[2], hs[2]]), jnp.bfloat16),
        b3=jnp.asarray(np.stack([hq[3], hs[3]])),
        n_q=1, n_s=101)


def build_params():
    p = PInit(0)
    P = dict()
    P["res"] = make_resnet50(p)
    P["f1e01"] = p.conv(256, 16, 1)
    P["f1e02"] = p.grouped_conv(1024, 64, 16)
    P["f2e01"] = p.conv(512, 32, 1)
    P["f2e02"] = p.grouped_conv(512, 64, 32)
    P["f3e01"] = p.conv(1024, 64, 1)
    P["f3e02"] = p.grouped_conv(256, 64, 64)
    P["f4e"] = p.conv(2048, 320, 3, pad=1)
    P["conv"] = [p.conv(512, 256, 1, bias=True),
                 p.conv(256, 256, 3, pad=1, bias=True),
                 p.conv(256, 256, 3, pad=1, bias=True),
                 p.conv(256, 512, 1, bias=True)]
    # attention branches: the two grouped stages of att and att2 share shapes,
    # so their weights are stacked on a leading "path" axis of extent 2.
    g1 = [p.grouped_conv(512, 2048, 512, bn=False) for _ in range(2)]
    g2 = [p.grouped_conv(2048, 512, 512, bn=False) for _ in range(2)]
    P["att_w1"] = jnp.stack([g1[0]["w"], g1[1]["w"]])    # (2, 9, 4, 512)
    P["att_w2"] = jnp.stack([g2[0]["w"], g2[1]["w"]])    # (2, 36, 1, 512)
    P["att_1x1"] = [
        [p.conv(512, 256, 1, bn=False), p.conv(256, 512, 1, bn=False)],
        [p.conv(512, 256, 1, bn=False), p.conv(256, 512, 1, bn=False)],
    ]
    P["heads"] = _make_heads(p)
    return P


# ---------------------------------------------------------------------------
# Forward
# ---------------------------------------------------------------------------
def bottleneck_fwd(x, blk):
    residual = x
    out = conv_apply(x, blk["conv1"], "relu")
    out = conv_apply(out, blk["conv2"], "relu")
    out = conv_apply(out, blk["conv3"], "none")
    if blk["downsample"] is not None:
        residual = conv_apply(x, blk["downsample"], "none")
    return jnp.maximum(out + residual, 0.0)


def att_pair(x, P):
    # att and att2 batched on a parallel path axis of 2.
    B, H, W, C = x.shape
    xf = jnp.broadcast_to(x[None, None], (2, 1, B, H, W, C))
    h = grouped_conv3x3(xf, P["att_w1"])          # (2, 4, B, H, W, 512)
    y = grouped_conv3x3(h, P["att_w2"])           # (2, 1, B, H, W, 512)
    outs = []
    for i in range(2):
        t = y[i, 0].reshape(B * H * W, C)
        t = matmul_bias(t, P["att_1x1"][i][0], "relu")
        t = matmul_bias(t, P["att_1x1"][i][1], "relu")
        outs.append(t.reshape(B, H, W, C))
    return outs[0], outs[1]


def iqanet03_forward(P, img):
    # one-time NCHW -> NHWC; all internal tensors are NHWC bf16
    x = jnp.transpose(img, (0, 2, 3, 1)).astype(jnp.bfloat16)

    # ResNet-50 backbone
    x = conv_apply(x, P["res"]["conv1"], "relu")
    x = maxpool3x3s2p1(x)
    feats = []
    for layer in P["res"]["layers"]:
        for blk in layer:
            x = bottleneck_fwd(x, blk)
        feats.append(x)
    f1, f2, f3, f4 = feats

    f1 = conv_apply(f1, P["f1e01"], "relu")
    f1 = chunk_cat(f1, 8, 8)
    f1 = grouped_conv_nhwc(f1, P["f1e02"])

    f2 = conv_apply(f2, P["f2e01"], "relu")
    f2 = chunk_cat(f2, 4, 4)
    f2 = grouped_conv_nhwc(f2, P["f2e02"])

    f3 = conv_apply(f3, P["f3e01"], "relu")
    f3 = chunk_cat(f3, 2, 2)
    f3 = grouped_conv_nhwc(f3, P["f3e02"])

    f4 = conv_apply(f4, P["f4e"], "relu")

    x = jnp.concatenate([f1, f2, f3, f4], axis=-1)
    for layer in P["conv"]:
        x = conv_apply(x, layer, "relu")

    x1 = x  # isca == 0 -> no channel attention

    attw, attw2 = att_pair(x, P)

    x2p, xsp, d1, d2, e = attention_fuse(x1, attw, attw2)

    q, s = dense_pair(x2p, xsp, P["heads"])

    return {"Q": q, "S": s, "D1": d1, "D2": d2, "E": e}


if __name__ == "__main__":
    params = build_params()
    key = jax.random.PRNGKey(0)
    # Input image small enough to keep the demo fast: f4 spatial = 2x2.
    img = jax.random.normal(key, (2, 3, 64, 64), dtype=jnp.float32)
    out = iqanet03_forward(params, img)
    out = jax.tree_util.tree_map(jax.block_until_ready, out)
    assert out["Q"].shape == (2, 1)
    assert out["S"].shape == (2, 101)
    assert out["D1"].shape == (2, 2, 2)
    assert out["D2"].shape == (2, 2, 2)
    assert out["E"].shape == (2,)
    for v in jax.tree_util.tree_leaves(out):
        assert bool(jnp.all(jnp.isfinite(v)))
    print("KERNEL_OK")
</pallas_src>

<mosaic_0001>
module attributes {stable_mosaic.version = 11 : i64} {
  func.func @_mm_kernel(%arg0: i32, %arg1: i32, %arg2: i32, %arg3: memref<256x160xbf16, #tpu.memory_space<vmem>>, %arg4: memref<160x128xbf16, #tpu.memory_space<vmem>>, %arg5: memref<1x128xf32, #tpu.memory_space<vmem>>, %arg6: memref<256x128xbf16, #tpu.memory_space<vmem>>, %arg7: memref<256x128xf32, #tpu.memory_space<vmem>>) attributes {dimension_semantics = [#tpu.dimension_semantics<parallel>, #tpu.dimension_semantics<parallel>, #tpu.dimension_semantics<arbitrary>], iteration_bounds = array<i64: 8, 1, 1>, scalar_prefetch = 0 : i64, scratch_operands = 1 : i64, tpu.core_type = #tpu.core_type<tc>, window_params = [{transform_indices = @transform_0, window_bounds = array<i64: 256, 160>}, {transform_indices = @transform_1, window_bounds = array<i64: 160, 128>}, {transform_indices = @transform_2, window_bounds = array<i64: 1, 128>}, {transform_indices = @transform_3, window_bounds = array<i64: 256, 128>}]} {
    %c0_i32 = arith.constant 0 : i32
    %0 = arith.cmpi eq, %arg2, %c0_i32 : i32
    %1 = arith.extui %0 : i1 to i32
    %c0_i32_0 = arith.constant 0 : i32
    %2 = arith.cmpi ne, %1, %c0_i32_0 : i32
    scf.if %2 {
      %cst_10 = arith.constant 0.000000e+00 : f32
      %12 = vector.broadcast %cst_10 : f32 to vector<256x128xf32>
      %c0_11 = arith.constant 0 : index
      %c0_12 = arith.constant 0 : index
      %13 = vector.load %arg7[%c0_11, %c0_12] : memref<256x128xf32, #tpu.memory_space<vmem>>, vector<256x128xf32>
      tpu.vector_store %arg7[%c0_11, %c0_12], %12 {strides = array<i32>} : memref<256x128xf32, #tpu.memory_space<vmem>>, vector<256x128xf32>,
    } else {
    }
    %c0 = arith.constant 0 : index
    %c0_1 = arith.constant 0 : index
    %3 = vector.load %arg7[%c0, %c0_1] : memref<256x128xf32, #tpu.memory_space<vmem>>, vector<256x128xf32>
    %c0_2 = arith.constant 0 : index
    %c0_3 = arith.constant 0 : index
    %4 = vector.load %arg3[%c0_2, %c0_3] : memref<256x160xbf16, #tpu.memory_space<vmem>>, vector<256x160xbf16>
    %c0_4 = arith.constant 0 : index
    %c0_5 = arith.constant 0 : index
    %5 = vector.load %arg4[%c0_4, %c0_5] : memref<160x128xbf16, #tpu.memory_space<vmem>>, vector<160x128xbf16>
    %cst = arith.constant dense<0.000000e+00> : vector<256x128xf32>
    %6 = tpu.matmul %4, %5, %cst {dimension_numbers = #tpu.dot_dimension_numbers<[1], [0], [0], [1], [0, 0, 1, 1], [], []>} : vector<256x160xbf16>, vector<160x128xbf16>, vector<256x128xf32> -> vector<256x128xf32>
    %7 = arith.addf %3, %6 : vector<256x128xf32>
    %c0_6 = arith.constant 0 : index
    %c0_7 = arith.constant 0 : index
    %8 = vector.load %arg7[%c0_6, %c0_7] : memref<256x128xf32, #tpu.memory_space<vmem>>, vector<256x128xf32>
    tpu.vector_store %arg7[%c0_6, %c0_7], %7 {strides = array<i32>} : memref<256x128xf32, #tpu.memory_space<vmem>>, vector<256x128xf32>,
    %c0_i32_8 = arith.constant 0 : i32
    %9 = arith.cmpi eq, %arg2, %c0_i32_8 : i32
    %10 = arith.extui %9 : i1 to i32
    %c0_i32_9 = arith.constant 0 : i32
    %11 = arith.cmpi ne, %10, %c0_i32_9 : i32
    scf.if %11 {
      %c0_10 = arith.constant 0 : index
      %c0_11 = arith.constant 0 : index
      %12 = vector.load %arg7[%c0_10, %c0_11] : memref<256x128xf32, #tpu.memory_space<vmem>>, vector<256x128xf32>
      %c0_12 = arith.constant 0 : index
      %c0_13 = arith.constant 0 : index
      %13 = vector.load %arg5[%c0_12, %c0_13] : memref<1x128xf32, #tpu.memory_space<vmem>>, vector<1x128xf32>
      %14 = vector.broadcast %13 : vector<1x128xf32> to vector<256x128xf32>
      %15 = arith.addf %12, %14 : vector<256x128xf32>
      %cst_14 = arith.constant 0.000000e+00 : f32
      %16 = vector.broadcast %cst_14 : f32 to vector<256x128xf32>
      %17 = arith.maximumf %15, %16 : vector<256x128xf32>
      %18 = arith.truncf %17 : vector<256x128xf32> to vector<256x128xbf16>
      %c0_15 = arith.constant 0 : index
      %c0_16 = arith.constant 0 : index
      %19 = vector.load %arg6[%c0_15, %c0_16] : memref<256x128xbf16, #tpu.memory_space<vmem>>, vector<256x128xbf16>
      tpu.vector_store %arg6[%c0_15, %c0_16], %18 {strides = array<i32>} : memref<256x128xbf16, #tpu.memory_space<vmem>>, vector<256x128xbf16>,
    } else {
    }
    return
  }
  func.func @transform_0(%arg0: i32, %arg1: i32, %arg2: i32) -> (i32, i32) {
    %c0_i32 = arith.constant 0 : i32
    return %arg0, %arg2 : i32, i32
  }
  func.func @transform_1(%arg0: i32, %arg1: i32, %arg2: i32) -> (i32, i32) {
    %c0_i32 = arith.constant 0 : i32
    return %arg2, %arg1 : i32, i32
  }
  func.func @transform_2(%arg0: i32, %arg1: i32, %arg2: i32) -> (i32, i32) {
    %c0_i32 = arith.constant 0 : i32
    %c0_i32_0 = arith.constant 0 : i32
    return %c0_i32, %arg1 : i32, i32
  }
  func.func @transform_3(%arg0: i32, %arg1: i32, %arg2: i32) -> (i32, i32) {
    %c0_i32 = arith.constant 0 : i32
    return %arg0, %arg1 : i32, i32
  }
}

</mosaic_0001>

<llo_original>
// kernel: tpu_custom_call.1
$region0: #{tpu_custom_call.1}
  #allocation0 [shape = 'u32[]', space=smem, size = 0x4, offset = 0x4, fixed_abs, tag = 'smem constant byte address 0x4 - core index']
  #allocation1 [shape = 'u32[144,128]{1,0:T(1,128)}', space=vmem, size = 0x12000, scoped, tag = 'internal scratch']
  #allocation2 [shape = 'f32[256,128]{1,0:T(8,128)}', space=vmem, size = 0x20000, scoped, tag = 'scratch operand']
  %s0 = inlined_call_operand.vmem [shape: bf16[2048,160], index: 0, kind: input, shape index: {}]
  %s1 = inlined_call_operand.vmem [shape: bf16[160,128], index: 1, kind: input, shape index: {}]
  %s2 = inlined_call_operand.vmem [shape: f32[1,128], index: 2, kind: input, shape index: {}]
  %s3 = inlined_call_operand.hbm [shape: bf16[2048,128], index: 3, kind: output, shape index: {}]
  %s4 = sld [smem:[#allocation0]]
  $region53: #{tpu_custom_call.1} parent=0
    _
  %s6 = ssub.s32 1, %s4
  %s7 = scalar_select 0, %s6, %s4
  $region1: #{tpu_custom_call.1} parent=0
    #allocation3 [shape = 'u8[131072]{0}', space=vmem, size = 0x20000, scoped, tag = 'output window, operand 0']
    #allocation4 [shape = 's32[2]{0}', space=sflag, size = 0x8, scoped, tag = 'scoped memory for tpu_custom_call.1']
    %8 = vsyncpa [#allocation4], 0
    %s9 = scalar_lea.sflag [#allocation4], 1
    %10 = vsyncpa %s9, 0
    loop: start=0, step=1, limit=10
    $region2: #{tpu_custom_call.1} parent=1 // loop_pre_header
      _
    $region3: #{tpu_custom_call.1} parent=1 // loop_header
      %s12 = sphi 0, %s16
      %p13 = scmp.ge.s32.totalorder %s12, 10
      %s19 = sphi 0, %s38
      %s20 = sphi 0, %s34
      %s21 = sphi 0, %s30
      %s22 = sphi 0, %s19
      %s23 = sphi 0, %s20
      %s24 = sphi 0, %s21
      %s25 = sphi 0, %s22
      %s26 = sphi 0, %s23
      %s27 = sphi 0, %s24
      %s43 = sphi 0, %s45
      %s46 = sphi 0, %s43
      %s47 = sphi 0, %s46
      %s63 = sphi 0, %s47
      %s71 = sphi 0, %s73
      %s74 = sphi 0, %s71
      %s75 = sphi 0, %s74
      %s91 = sphi 0, %s75
      %s97 = sphi 0, %s99
      %s100 = sphi 0, %s97
      %s101 = sphi 0, %s100
      %s117 = sphi 0, %s101
      %s125 = sphi 0, %s127
      %s128 = sphi 0, %s125
      %s129 = sphi 0, %s128
      %s145 = sphi 0, %s129
    $region4: #{tpu_custom_call.1} parent=1 // loop_header_branch
      %15 = sbr.rel (%p13) target = $region8
    $region5: #{tpu_custom_call.1} parent=1 // loop_body
      %s17 = ssub.s32 %s12, 1
      %s18 = ssub.s32 %s12, 2
      %s28 = sadd.s32 1, %s21
      %p29 = scmp.ge.s32.totalorder %s28, 1
      %s30 = scalar_select %p29, 0, %s28
      %s31 = sadd.s32 1, %s20
      %s32 = scalar_select %p29, %s31, %s20
      %p33 = scmp.ge.s32.totalorder %s32, 1
      %s34 = scalar_select %p33, 0, %s32
      %s35 = sadd.s32 1, %s19
      %s36 = scalar_select %p33, %s35, %s19
      %p37 = scmp.ge.s32.totalorder %s36, 8
      %s38 = scalar_select %p37, 0, %s36
      %s39 = ssub.s32 %s19, %s38
      %s40 = ssub.s32 %s21, %s30
      %s41 = sor.u32 %s39, %s40
      %p42 = scmp.eq.s32.totalorder %s41, 0
      %s44 = sadd.s32 %s43, 1
      %s45 = scalar_select %p42, %s43, %s44
      %p48 = pneg %p42
      %p49 = scmp.eq.s32.totalorder %s12, 7
      %p50 = por %p48, %p49
      %p51 = scmp.ne.s32.totalorder %s43, %s46
      %p52 = scmp.eq.s32.totalorder %s12, 0
      %p53 = por %p51, %p52
      %p54 = scmp.ne.s32.totalorder %s43, %s46
      %p55 = scmp.eq.s32.totalorder %s17, 7
      %p56 = por %p54, %p55
      %p57 = scmp.ne.s32.totalorder %s46, %s47
      %p58 = scmp.eq.s32.totalorder %s17, 0
      %p59 = por %p57, %p58
      %p60 = scmp.ne.s32.totalorder %s46, %s47
      %p61 = scmp.eq.s32.totalorder %s18, 7
      %p62 = por %p60, %p61
      %p64 = scmp.ne.s32.totalorder %s47, %s63
      %p65 = scmp.eq.s32.totalorder %s18, 0
      %p66 = por %p64, %p65
      %s67 = ssub.s32 %s21, %s30
      %s68 = ssub.s32 %s20, %s34
      %s69 = sor.u32 %s67, %s68
      %p70 = scmp.eq.s32.totalorder %s69, 0
      %s72 = sadd.s32 %s71, 1
      %s73 = scalar_select %p70, %s71, %s72
      %p76 = pneg %p70
      %p77 = scmp.eq.s32.totalorder %s12, 7
      %p78 = por %p76, %p77
      %p79 = scmp.ne.s32.totalorder %s71, %s74
      %p80 = scmp.eq.s32.totalorder %s12, 0
      %p81 = por %p79, %p80
      %p82 = scmp.ne.s32.totalorder %s71, %s74
      %p83 = scmp.eq.s32.totalorder %s17, 7
      %p84 = por %p82, %p83
      %p85 = scmp.ne.s32.totalorder %s74, %s75
      %p86 = scmp.eq.s32.totalorder %s17, 0
      %p87 = por %p85, %p86
      %p88 = scmp.ne.s32.totalorder %s74, %s75
      %p89 = scmp.eq.s32.totalorder %s18, 7
      %p90 = por %p88, %p89
      %p92 = scmp.ne.s32.totalorder %s75, %s91
      %p93 = scmp.eq.s32.totalorder %s18, 0
      %p94 = por %p92, %p93
      %s95 = ssub.s32 %s20, %s34
      %p96 = scmp.eq.s32.totalorder %s95, 0
      %s98 = sadd.s32 %s97, 1
      %s99 = scalar_select %p96, %s97, %s98
      %p102 = pneg %p96
      %p103 = scmp.eq.s32.totalorder %s12, 7
      %p104 = por %p102, %p103
      %p105 = scmp.ne.s32.totalorder %s97, %s100
      %p106 = scmp.eq.s32.totalorder %s12, 0
      %p107 = por %p105, %p106
      %p108 = scmp.ne.s32.totalorder %s97, %s100
      %p109 = scmp.eq.s32.totalorder %s17, 7
      %p110 = por %p108, %p109
      %p111 = scmp.ne.s32.totalorder %s100, %s101
      %p112 = scmp.eq.s32.totalorder %s17, 0
      %p113 = por %p111, %p112
      %p114 = scmp.ne.s32.totalorder %s100, %s101
      %p115 = scmp.eq.s32.totalorder %s18, 7
      %p116 = por %p114, %p115
      %p118 = scmp.ne.s32.totalorder %s101, %s117
      %p119 = scmp.eq.s32.totalorder %s18, 0
      %p120 = por %p118, %p119
      %s121 = ssub.s32 %s19, %s38
      %s122 = ssub.s32 %s20, %s34
      %s123 = sor.u32 %s121, %s122
      %p124 = scmp.eq.s32.totalorder %s123, 0
      %s126 = sadd.s32 %s125, 1
      %s127 = scalar_select %p124, %s125, %s126
      %p130 = pneg %p124
      %p131 = scmp.eq.s32.totalorder %s12, 7
      %p132 = por %p130, %p131
      %p133 = scmp.ne.s32.totalorder %s125, %s128
      %p134 = scmp.eq.s32.totalorder %s12, 0
      %p135 = por %p133, %p134
      %p136 = scmp.ne.s32.totalorder %s125, %s128
      %p137 = scmp.eq.s32.totalorder %s17, 7
      %p138 = por %p136, %p137
      %p139 = scmp.ne.s32.totalorder %s128, %s129
      %p140 = scmp.eq.s32.totalorder %s17, 0
      %p141 = por %p139, %p140
      %p142 = scmp.ne.s32.totalorder %s128, %s129
      %p143 = scmp.eq.s32.totalorder %s18, 7
      %p144 = por %p142, %p143
      %p146 = scmp.ne.s32.totalorder %s129, %s145
      %p147 = scmp.eq.s32.totalorder %s18, 0
      %p148 = por %p146, %p147
      %p149 = scmp.le.s32.totalorder 1, %s12
      %p150 = scmp.lt.s32.totalorder %s12, 9
      %p151 = pnand %p149, %p150
      %p152 = pneg %p151
      // Predicated region
      $region9: #{tpu_custom_call.1} parent=5 // pred_check
        _
      $region10: #{tpu_custom_call.1} parent=5 // pred_check_branch
        %154 = sbr.rel (%p151) target = $region12
      $region11: #{tpu_custom_call.1} parent=5 // pred_region
        %s155 = ssub.s32 %s12, 1
        // Predicated region
        $region13: #{tpu_custom_call.1} parent=11 // pred_check
          %p156 = pneg %p87
        $region14: #{tpu_custom_call.1} parent=11 // pred_check_branch
          %158 = sbr.rel (%p156) target = $region16
        $region15: #{tpu_custom_call.1} parent=11 // pred_region
          %s159 = smul.u32 20, %s24
          %p160 = scmp.lt.s32.totalorder %s159, 19
          %s161 = scalar_select %p160, %s159, 19
          %p162 = scmp.lt.s32.totalorder %s23, 0
          %s163 = scalar_select %p162, %s23, 0
          %s164 = sadd.s32 %s163, %s161
          %s165 = smul.addr %s164, 4
          %s166 = scalar_lea.vmem %s1, %s165
          %s167 = smul.u32 20, %s24
        $region16: #{tpu_custom_call.1} parent=11 // pred_fallthru
          _
        // Predicated region
        $region17: #{tpu_custom_call.1} parent=11 // pred_check
          %p168 = pneg %p113
        $region18: #{tpu_custom_call.1} parent=11 // pred_check_branch
          %170 = sbr.rel (%p168) target = $region20
        $region19: #{tpu_custom_call.1} parent=11 // pred_region
          %p171 = scmp.lt.s32.totalorder %s23, 0
          %s172 = scalar_select %p171, %s23, 0
          %s173 = scalar_lea.vmem %s2, %s172
        $region20: #{tpu_custom_call.1} parent=11 // pred_fallthru
          _
      $region12: #{tpu_custom_call.1} parent=5 // pred_fallthru
        _
      %p174 = scmp.lt.s32.totalorder %s12, 8
      // Predicated region
      $region21: #{tpu_custom_call.1} parent=5 // pred_check
        %p175 = pneg %p174
      $region22: #{tpu_custom_call.1} parent=5 // pred_check_branch
        %177 = sbr.rel (%p175) target = $region24
      $region23: #{tpu_custom_call.1} parent=5 // pred_region
        // Predicated region
        $region25: #{tpu_custom_call.1} parent=23 // pred_check
          %p178 = pneg %p53
        $region26: #{tpu_custom_call.1} parent=23 // pred_check_branch
          %180 = sbr.rel (%p178) target = $region28
        $region27: #{tpu_custom_call.1} parent=23 // pred_region
          %s181 = smul.u32 32, %s19
          %s182 = smul.u32 2, %s21
          %p183 = scmp.lt.s32.totalorder %s181, 255
          %s184 = scalar_select %p183, %s181, 255
          %p185 = scmp.lt.s32.totalorder %s182, 1
          %s186 = scalar_select %p185, %s182, 1
          %s187 = smul.addr %s184, 2
          %s188 = sadd.s32 %s186, %s187
          %s189 = smul.addr %s188, 4
          %s190 = scalar_lea.vmem %s0, %s189
          %s191 = smul.u32 32, %s19
          %s192 = smul.u32 2, %s21
        $region28: #{tpu_custom_call.1} parent=23 // pred_fallthru
          _
      $region24: #{tpu_custom_call.1} parent=5 // pred_fallthru
        _
      %p193 = scmp.le.s32.totalorder 1, %s12
      %p194 = scmp.lt.s32.totalorder %s12, 9
      %p195 = pnand %p193, %p194
      %p196 = pneg %p195
      // Predicated region
      $region29: #{tpu_custom_call.1} parent=5 // pred_check
        _
      $region30: #{tpu_custom_call.1} parent=5 // pred_check_branch
        %198 = sbr.rel (%p195) target = $region32
      $region31: #{tpu_custom_call.1} parent=5 // pred_region
        %s199 = ssub.s32 %s12, 1
        %s200 = smul.u32 32, %s22
        %s201 = smul.u32 2, %s24
        %p202 = scmp.lt.s32.totalorder %s200, 255
        %s203 = scalar_select %p202, %s200, 255
        %p204 = scmp.lt.s32.totalorder %s201, 1
        %s205 = scalar_select %p204, %s201, 1
        %s206 = smul.addr %s203, 2
        %s207 = sadd.s32 %s205, %s206
        %s208 = smul.addr %s207, 4
        %s209 = scalar_lea.vmem %s0, %s208
        %p210 = pneg %p59
        %p211 = pneg %p56
        %s212 = smul.u32 20, %s24
        %p213 = scmp.lt.s32.totalorder %s212, 19
        %s214 = scalar_select %p213, %s212, 19
        %p215 = scmp.lt.s32.totalorder %s23, 0
        %s216 = scalar_select %p215, %s23, 0
        %s217 = sadd.s32 %s216, %s214
        %s218 = smul.addr %s217, 4
        %s219 = scalar_lea.vmem %s1, %s218
        %p220 = pneg %p87
        %p221 = pneg %p84
        %p222 = scmp.lt.s32.totalorder %s23, 0
        %s223 = scalar_select %p222, %s23, 0
        %s224 = scalar_lea.vmem %s2, %s223
        %p225 = pneg %p113
        %p226 = pneg %p110
        %p227 = pneg %p141
        %p228 = pneg %p138
        %s229 = sand.u32 %s128, 1
        %s230 = scalar_lea.sflag [#allocation4], %s229
        %s231 = sand.u32 %s128, 1
        %s232 = smul.addr %s231, 128
        %s233 = scalar_lea.vmem [#allocation3], %s232
        %s234 = smul.u32 32, %s22
        %s235 = smul.u32 2, %s24
        %p236 = scmp.lt.s32.totalorder %s234, 255
        %s237 = scalar_select %p236, %s234, 255
        %p238 = scmp.lt.s32.totalorder %s235, 1
        %s239 = scalar_select %p238, %s235, 1
        %s240 = smul.addr %s237, 2
        %s241 = sadd.s32 %s239, %s240
        %s242 = smul.addr %s241, 4
        %s243 = scalar_lea.vmem %s0, %s242
        %s244 = smul.u32 32, %s22
        %s245 = smul.u32 2, %s24
        %s246 = smul.u32 20, %s24
        %p247 = scmp.lt.s32.totalorder %s246, 19
        %s248 = scalar_select %p247, %s246, 19
        %p249 = scmp.lt.s32.totalorder %s23, 0
        %s250 = scalar_select %p249, %s23, 0
        %s251 = sadd.s32 %s250, %s248
        %s252 = smul.addr %s251, 4
        %s253 = scalar_lea.vmem %s1, %s252
        %s254 = smul.u32 20, %s24
        %p255 = scmp.lt.s32.totalorder %s23, 0
        %s256 = scalar_select %p255, %s23, 0
        %s257 = scalar_lea.vmem %s2, %s256
        %s258 = smul.u32 32, %s22
        %p260 = scmp.eq.s32.totalorder %s24, 0
        // Predicated region
        $region33: #{tpu_custom_call.1} parent=31 // pred_check
          %p261 = pneg %p260
        $region34: #{tpu_custom_call.1} parent=31 // pred_check_branch
          %263 = sbr.rel (%p261) target = $region36
        $region35: #{tpu_custom_call.1} parent=31 // pred_region
          %264 = vst [vmem:[#allocation2] sm:$0xff] 0.0
          %265 = vst [vmem:[#allocation2 + $0x8] sm:$0xff] 0.0
          %266 = vst [vmem:[#allocation2 + $0x10] sm:$0xff] 0.0
          %267 = vst [vmem:[#allocation2 + $0x18] sm:$0xff] 0.0
          %268 = vst [vmem:[#allocation2 + $0x20] sm:$0xff] 0.0
          %269 = vst [vmem:[#allocation2 + $0x28] sm:$0xff] 0.0
          %270 = vst [vmem:[#allocation2 + $0x30] sm:$0xff] 0.0
          %271 = vst [vmem:[#allocation2 + $0x38] sm:$0xff] 0.0
          %272 = vst [vmem:[#allocation2 + $0x40] sm:$0xff] 0.0
          %273 = vst [vmem:[#allocation2 + $0x48] sm:$0xff] 0.0
          %274 = vst [vmem:[#allocation2 + $0x50] sm:$0xff] 0.0
          %275 = vst [vmem:[#allocation2 + $0x58] sm:$0xff] 0.0
          %276 = vst [vmem:[#allocation2 + $0x60] sm:$0xff] 0.0
          %277 = vst [vmem:[#allocation2 + $0x68] sm:$0xff] 0.0
          %278 = vst [vmem:[#allocation2 + $0x70] sm:$0xff] 0.0
          %279 = vst [vmem:[#allocation2 + $0x78] sm:$0xff] 0.0
          %280 = vst [vmem:[#allocation2 + $0x80] sm:$0xff] 0.0
          %281 = vst [vmem:[#allocation2 + $0x88] sm:$0xff] 0.0
          %282 = vst [vmem:[#allocation2 + $0x90] sm:$0xff] 0.0
          %283 = vst [vmem:[#allocation2 + $0x98] sm:$0xff] 0.0
          %284 = vst [vmem:[#allocation2 + $0xa0] sm:$0xff] 0.0
          %285 = vst [vmem:[#allocation2 + $0xa8] sm:$0xff] 0.0
          %286 = vst [vmem:[#allocation2 + $0xb0] sm:$0xff] 0.0
          %287 = vst [vmem:[#allocation2 + $0xb8] sm:$0xff] 0.0
          %288 = vst [vmem:[#allocation2 + $0xc0] sm:$0xff] 0.0
          %289 = vst [vmem:[#allocation2 + $0xc8] sm:$0xff] 0.0
          %290 = vst [vmem:[#allocation2 + $0xd0] sm:$0xff] 0.0
          %291 = vst [vmem:[#allocation2 + $0xd8] sm:$0xff] 0.0
          %292 = vst [vmem:[#allocation2 + $0xe0] sm:$0xff] 0.0
          %293 = vst [vmem:[#allocation2 + $0xe8] sm:$0xff] 0.0
          %294 = vst [vmem:[#allocation2 + $0xf0] sm:$0xff] 0.0
          %295 = vst [vmem:[#allocation2 + $0xf8] sm:$0xff] 0.0
        $region36: #{tpu_custom_call.1} parent=31 // pred_fallthru
          _
        %v296 = vld [vmem:[#allocation2] sm:$0xff]
        %v297 = vld [vmem:[#allocation2 + $0x8] sm:$0xff]
        %v298 = vld [vmem:[#allocation2 + $0x10] sm:$0xff]
        %v299 = vld [vmem:[#allocation2 + $0x18] sm:$0xff]
        %v300 = vld [vmem:[#allocation2 + $0x20] sm:$0xff]
        %v301 = vld [vmem:[#allocation2 + $0x28] sm:$0xff]
        %v302 = vld [vmem:[#allocation2 + $0x30] sm:$0xff]
        %v303 = vld [vmem:[#allocation2 + $0x38] sm:$0xff]
        %v304 = vld [vmem:[#allocation2 + $0x40] sm:$0xff]
        %v305 = vld [vmem:[#allocation2 + $0x48] sm:$0xff]
        %v306 = vld [vmem:[#allocation2 + $0x50] sm:$0xff]
        %v307 = vld [vmem:[#allocation2 + $0x58] sm:$0xff]
        %v308 = vld [vmem:[#allocation2 + $0x60] sm:$0xff]
        %v309 = vld [vmem:[#allocation2 + $0x68] sm:$0xff]
        %v310 = vld [vmem:[#allocation2 + $0x70] sm:$0xff]
        %v311 = vld [vmem:[#allocation2 + $0x78] sm:$0xff]
        %v312 = vld [vmem:[#allocation2 + $0x80] sm:$0xff]
        %v313 = vld [vmem:[#allocation2 + $0x88] sm:$0xff]
        %v314 = vld [vmem:[#allocation2 + $0x90] sm:$0xff]
        %v315 = vld [vmem:[#allocation2 + $0x98] sm:$0xff]
        %v316 = vld [vmem:[#allocation2 + $0xa0] sm:$0xff]
        %v317 = vld [vmem:[#allocation2 + $0xa8] sm:$0xff]
        %v318 = vld [vmem:[#allocation2 + $0xb0] sm:$0xff]
        %v319 = vld [vmem:[#allocation2 + $0xb8] sm:$0xff]
        %v320 = vld [vmem:[#allocation2 + $0xc0] sm:$0xff]
        %v321 = vld [vmem:[#allocation2 + $0xc8] sm:$0xff]
        %v322 = vld [vmem:[#allocation2 + $0xd0] sm:$0xff]
        %v323 = vld [vmem:[#allocation2 + $0xd8] sm:$0xff]
        %v324 = vld [vmem:[#allocation2 + $0xe0] sm:$0xff]
        %v325 = vld [vmem:[#allocation2 + $0xe8] sm:$0xff]
        %v326 = vld [vmem:[#allocation2 + $0xf0] sm:$0xff]
        %v327 = vld [vmem:[#allocation2 + $0xf8] sm:$0xff]
        %v328 = vld [vmem:[%s243] sm:$0xff]
        %v329 = vld [vmem:[%s243 + $0x8] sm:$0xff]
        %v330 = vld [vmem:[%s243 + $0x10] sm:$0xff]
        %v331 = vld [vmem:[%s243 + $0x18] sm:$0xff]
        %v332 = vld [vmem:[%s243 + $0x20] sm:$0xff]
        %v333 = vld [vmem:[%s243 + $0x28] sm:$0xff]
        %v334 = vld [vmem:[%s243 + $0x30] sm:$0xff]
        %v335 = vld [vmem:[%s243 + $0x38] sm:$0xff]
        %v336 = vld [vmem:[%s243 + $0x40] sm:$0xff]
        %v337 = vld [vmem:[%s243 + $0x48] sm:$0xff]
        %v338 = vld [vmem:[%s243 + $0x50] sm:$0xff]
        %v339 = vld [vmem:[%s243 + $0x58] sm:$0xff]
        %v340 = vld [vmem:[%s243 + $0x60] sm:$0xff]
        %v341 = vld [vmem:[%s243 + $0x68] sm:$0xff]
        %v342 = vld [vmem:[%s243 + $0x70] sm:$0xff]
        %v343 = vld [vmem:[%s243 + $0x78] sm:$0xff]
        %v344 = vld [vmem:[%s243 + $0x80] sm:$0xff]
        %v345 = vld [vmem:[%s243 + $0x88] sm:$0xff]
        %v346 = vld [vmem:[%s243 + $0x90] sm:$0xff]
        %v347 = vld [vmem:[%s243 + $0x98] sm:$0xff]
        %v348 = vld [vmem:[%s243 + $0xa0] sm:$0xff]
        %v349 = vld [vmem:[%s243 + $0xa8] sm:$0xff]
        %v350 = vld [vmem:[%s243 + $0xb0] sm:$0xff]
        %v351 = vld [vmem:[%s243 + $0xb8] sm:$0xff]
        %v352 = vld [vmem:[%s243 + $0xc0] sm:$0xff]
        %v353 = vld [vmem:[%s243 + $0xc8] sm:$0xff]
        %v354 = vld [vmem:[%s243 + $0xd0] sm:$0xff]
        %v355 = vld [vmem:[%s243 + $0xd8] sm:$0xff]
        %v356 = vld [vmem:[%s243 + $0xe0] sm:$0xff]
        %v357 = vld [vmem:[%s243 + $0xe8] sm:$0xff]
        %v358 = vld [vmem:[%s243 + $0xf0] sm:$0xff]
        %v359 = vld [vmem:[%s243 + $0xf8] sm:$0xff]
        %v360 = vld [vmem:[%s253] sm:$0xf]
        %v361 = vld [vmem:[%s253 + $0x4] sm:$0xf]
        %v362 = vld [vmem:[%s253 + $0x8] sm:$0xf]
        %v363 = vld [vmem:[%s253 + $0xc] sm:$0xf]
        %v364 = vld [vmem:[%s253 + $0x10] sm:$0xf]
        %v365 = vld [vmem:[%s253 + $0x14] sm:$0xf]
        %v366 = vld [vmem:[%s253 + $0x18] sm:$0xf]
        %v367 = vld [vmem:[%s253 + $0x1c] sm:$0xf]
        %v368 = vld [vmem:[%s253 + $0x20] sm:$0xf]
        %v369 = vld [vmem:[%s253 + $0x24] sm:$0xf]
        %v370 = vld [vmem:[%s253 + $0x28] sm:$0xf]
        %v371 = vld [vmem:[%s253 + $0x2c] sm:$0xf]
        %v372 = vld [vmem:[%s253 + $0x30] sm:$0xf]
        %v373 = vld [vmem:[%s253 + $0x34] sm:$0xf]
        %v374 = vld [vmem:[%s253 + $0x38] sm:$0xf]
        %v375 = vld [vmem:[%s253 + $0x3c] sm:$0xf]
        %v376 = vld [vmem:[%s253 + $0x40] sm:$0xf]
        %v377 = vld [vmem:[%s253 + $0x44] sm:$0xf]
        %v378 = vld [vmem:[%s253 + $0x48] sm:$0xf]
        %v379 = vld [vmem:[%s253 + $0x4c] sm:$0xf]
        %v412 = vunpack.c.l.b16 %v328
        %v413 = vunpack.c.h.b16 %v328
        %v414 = vunpack.c.l.b16 %v329
        %v415 = vunpack.c.h.b16 %v329
        %v416 = vunpack.c.l.b16 %v330
        %v417 = vunpack.c.h.b16 %v330
        %v418 = vunpack.c.l.b16 %v331
        %v419 = vunpack.c.h.b16 %v331
        %v420 = vunpack.c.l.b16 %v332
        %v421 = vunpack.c.h.b16 %v332
        %v422 = vunpack.c.l.b16 %v333
        %v423 = vunpack.c.h.b16 %v333
        %v424 = vunpack.c.l.b16 %v334
        %v425 = vunpack.c.h.b16 %v334
        %v426 = vunpack.c.l.b16 %v335
        %v427 = vunpack.c.h.b16 %v335
        %v428 = vunpack.c.l.b16 %v336
        %v429 = vunpack.c.h.b16 %v336
        %v430 = vunpack.c.l.b16 %v337
        %v431 = vunpack.c.h.b16 %v337
        %v432 = vunpack.c.l.b16 %v338
        %v433 = vunpack.c.h.b16 %v338
        %v434 = vunpack.c.l.b16 %v339
        %v435 = vunpack.c.h.b16 %v339
        %v436 = vunpack.c.l.b16 %v340
        %v437 = vunpack.c.h.b16 %v340
        %v438 = vunpack.c.l.b16 %v341
        %v439 = vunpack.c.h.b16 %v341
        %v440 = vunpack.c.l.b16 %v342
        %v441 = vunpack.c.h.b16 %v342
        %v442 = vunpack.c.l.b16 %v343
        %v443 = vunpack.c.h.b16 %v343
        %v444 = vunpack.c.l.b16 %v344
        %v445 = vunpack.c.h.b16 %v344
        %v446 = vunpack.c.l.b16 %v345
        %v447 = vunpack.c.h.b16 %v345
        %v448 = vunpack.c.l.b16 %v346
        %v449 = vunpack.c.h.b16 %v346
        %v450 = vunpack.c.l.b16 %v347
        %v451 = vunpack.c.h.b16 %v347
        %v452 = vunpack.c.l.b16 %v348
        %v453 = vunpack.c.h.b16 %v348
        %v454 = vunpack.c.l.b16 %v349
        %v455 = vunpack.c.h.b16 %v349
        %v456 = vunpack.c.l.b16 %v350
        %v457 = vunpack.c.h.b16 %v350
        %v458 = vunpack.c.l.b16 %v351
        %v459 = vunpack.c.h.b16 %v351
        %v460 = vunpack.c.l.b16 %v352
        %v461 = vunpack.c.h.b16 %v352
        %v462 = vunpack.c.l.b16 %v353
        %v463 = vunpack.c.h.b16 %v353
        %v464 = vunpack.c.l.b16 %v354
        %v465 = vunpack.c.h.b16 %v354
        %v466 = vunpack.c.l.b16 %v355
        %v467 = vunpack.c.h.b16 %v355
        %v468 = vunpack.c.l.b16 %v356
        %v469 = vunpack.c.h.b16 %v356
        %v470 = vunpack.c.l.b16 %v357
        %v471 = vunpack.c.h.b16 %v357
        %v472 = vunpack.c.l.b16 %v358
        %v473 = vunpack.c.h.b16 %v358
        %v474 = vunpack.c.l.b16 %v359
        %v475 = vunpack.c.h.b16 %v359
        %v476 = vpack.c.b16 %v414, %v412
        %v477 = vpack.c.b16 %v415, %v413
        %v478 = vpack.c.b16 %v418, %v416
        %v479 = vpack.c.b16 %v419, %v417
        %v480 = vpack.c.b16 %v422, %v420
        %v481 = vpack.c.b16 %v423, %v421
        %v482 = vpack.c.b16 %v426, %v424
        %v483 = vpack.c.b16 %v427, %v425
        %v484 = vpack.c.b16 %v430, %v428
        %v485 = vpack.c.b16 %v431, %v429
        %v486 = vpack.c.b16 %v434, %v432
        %v487 = vpack.c.b16 %v435, %v433
        %v488 = vpack.c.b16 %v438, %v436
        %v489 = vpack.c.b16 %v439, %v437
        %v490 = vpack.c.b16 %v442, %v440
        %v491 = vpack.c.b16 %v443, %v441
        %v492 = vpack.c.b16 %v446, %v444
        %v493 = vpack.c.b16 %v447, %v445
        %v494 = vpack.c.b16 %v450, %v448
        %v495 = vpack.c.b16 %v451, %v449
        %v496 = vpack.c.b16 %v454, %v452
        %v497 = vpack.c.b16 %v455, %v453
        %v498 = vpack.c.b16 %v458, %v456
        %v499 = vpack.c.b16 %v459, %v457
        %v500 = vpack.c.b16 %v462, %v460
        %v501 = vpack.c.b16 %v463, %v461
        %v502 = vpack.c.b16 %v466, %v464
        %v503 = vpack.c.b16 %v467, %v465
        %v504 = vpack.c.b16 %v470, %v468
        %v505 = vpack.c.b16 %v471, %v469
        %v506 = vpack.c.b16 %v474, %v472
        %v507 = vpack.c.b16 %v475, %v473
        %v544 = vunpack.c.l.b16 %v360
        %v545 = vunpack.c.l.b16 %v361
        %v546 = vunpack.c.l.b16 %v362
        %v547 = vunpack.c.l.b16 %v363
        %v548 = vunpack.c.l.b16 %v364
        %v549 = vunpack.c.l.b16 %v365
        %v550 = vunpack.c.l.b16 %v366
        %v551 = vunpack.c.l.b16 %v367
        %v552 = vunpack.c.l.b16 %v368
        %v553 = vunpack.c.l.b16 %v369
        %v554 = vunpack.c.l.b16 %v370
        %v555 = vunpack.c.l.b16 %v371
        %v556 = vunpack.c.l.b16 %v372
        %v557 = vunpack.c.l.b16 %v373
        %v558 = vunpack.c.l.b16 %v374
        %v559 = vunpack.c.l.b16 %v375
        %v560 = vunpack.c.l.b16 %v376
        %v561 = vunpack.c.l.b16 %v377
        %v562 = vunpack.c.l.b16 %v378
        %v563 = vunpack.c.l.b16 %v379
        %v564 = vpack.c.b16 %v545, %v544
        %v565 = vpack.c.b16 %v547, %v546
        %v566 = vpack.c.b16 %v549, %v548
        %v567 = vpack.c.b16 %v551, %v550
        %v568 = vpack.c.b16 %v553, %v552
        %v569 = vpack.c.b16 %v555, %v554
        %v570 = vpack.c.b16 %v557, %v556
        %v571 = vpack.c.b16 %v559, %v558
        %v572 = vpack.c.b16 %v561, %v560
        %v573 = vpack.c.b16 %v563, %v562
        %vm584 = vcmask 261120
        %v586 = vsel %vm584, %v477, 0
        %v589 = vsel %vm584, %v479, 0
        %v592 = vsel %vm584, %v481, 0
        %v595 = vsel %vm584, %v483, 0
        %v598 = vsel %vm584, %v485, 0
        %v601 = vsel %vm584, %v487, 0
        %v604 = vsel %vm584, %v489, 0
        %v607 = vsel %vm584, %v491, 0
        %v610 = vsel %vm584, %v493, 0
        %v613 = vsel %vm584, %v495, 0
        %v616 = vsel %vm584, %v497, 0
        %v619 = vsel %vm584, %v499, 0
        %v622 = vsel %vm584, %v501, 0
        %v625 = vsel %vm584, %v503, 0
        %v628 = vsel %vm584, %v505, 0
        %v631 = vsel %vm584, %v507, 0
        %633 = vmatprep.subr.bf16.mxu0 0
        %634 = vmatpush1.bf16.msra.mxu0 %v564
        %635 = vmatprep.subr.bf16.mxu0 0
        %636 = vmatpush1.bf16.msra.mxu0 %v565
        %637 = vmatprep.subr.bf16.mxu0 0
        %638 = vmatpush1.bf16.msra.mxu0 %v566
        %639 = vmatprep.subr.bf16.mxu0 0
        %640 = vmatpush1.bf16.msra.mxu0 %v567
        %641 = vmatprep.subr.bf16.mxu0 0
        %642 = vmatpush1.bf16.msra.mxu0 %v568
        %643 = vmatprep.subr.bf16.mxu0 0
        %644 = vmatpush1.bf16.msra.mxu0 %v569
        %645 = vmatprep.subr.bf16.mxu0 0
        %646 = vmatpush1.bf16.msra.mxu0 %v570
        %647 = vmatprep.subr.bf16.mxu0 0
        %648 = vmatpush1.bf16.msra.mxu0 %v571
        %649 = vmatprep.subr.bf16.mxu0 0
        %650 = vmatpush1.bf16.msra.mxu0 %v572
        %651 = vmatprep.subr.bf16.mxu0 0
        %652 = vmatpush1.bf16.msra.mxu0 %v573
        %653 = vmatprep.subr.bf16.mxu0 0
        %654 = vmatpush1.bf16.msra.mxu0 0
        %655 = vmatprep.subr.bf16.mxu0 0
        %656 = vmatpush1.bf16.msra.mxu0 0
        %657 = vmatprep.subr.bf16.mxu0 0
        %658 = vmatpush1.bf16.msra.mxu0 0
        %659 = vmatprep.subr.bf16.mxu0 0
        %660 = vmatpush1.bf16.msra.mxu0 0
        %661 = vmatprep.subr.bf16.mxu0 0
        %662 = vmatpush1.bf16.msra.mxu0 0
        %663 = vmatprep.subr.bf16.mxu0 0
        %664 = vmatpush1.bf16.msra.mxu0 0
        %665 = vmatprep.mubr.bf16.mxu0 %v586
        %666 = vmatmul.mubr.bf16.gmra.mrb[0].mxu0 %v476
        %v667 = vpop.f32.mrb[0].mxu0
        %v668 = vadd.f32 0.0, %v667
        %v669 = vpop.f32.mrb[0].mxu0
        %v670 = vpop.f32.mrb[0].mxu0
        %v671 = vadd.f32 0.0, %v670
        %v672 = vpop.f32.mrb[0].mxu0
        %673 = vmatprep.mubr.bf16.mxu0 %v589
        %674 = vmatmul.mubr.bf16.gmra.mrb[0].mxu0 %v478
        %v675 = vpop.f32.mrb[0].mxu0
        %v676 = vadd.f32 0.0, %v675
        %v677 = vpop.f32.mrb[0].mxu0
        %v678 = vpop.f32.mrb[0].mxu0
        %v679 = vadd.f32 0.0, %v678
        %v680 = vpop.f32.mrb[0].mxu0
        %681 = vmatprep.mubr.bf16.mxu0 %v592
        %682 = vmatmul.mubr.bf16.gmra.mrb[0].mxu0 %v480
        %v683 = vpop.f32.mrb[0].mxu0
        %v684 = vadd.f32 0.0, %v683
        %v685 = vpop.f32.mrb[0].mxu0
        %v686 = vpop.f32.mrb[0].mxu0
        %v687 = vadd.f32 0.0, %v686
        %v688 = vpop.f32.mrb[0].mxu0
        %689 = vmatprep.mubr.bf16.mxu0 %v595
        %690 = vmatmul.mubr.bf16.gmra.mrb[0].mxu0 %v482
        %v691 = vpop.f32.mrb[0].mxu0
        %v692 = vadd.f32 0.0, %v691
        %v693 = vpop.f32.mrb[0].mxu0
        %v694 = vpop.f32.mrb[0].mxu0
        %v695 = vadd.f32 0.0, %v694
        %v696 = vpop.f32.mrb[0].mxu0
        %697 = vmatprep.mubr.bf16.mxu0 %v598
        %698 = vmatmul.mubr.bf16.gmra.mrb[0].mxu0 %v484
        %v699 = vpop.f32.mrb[0].mxu0
        %v700 = vadd.f32 0.0, %v699
        %v701 = vpop.f32.mrb[0].mxu0
        %v702 = vpop.f32.mrb[0].mxu0
        %v703 = vadd.f32 0.0, %v702
        %v704 = vpop.f32.mrb[0].mxu0
        %705 = vmatprep.mubr.bf16.mxu0 %v601
        %706 = vmatmul.mubr.bf16.gmra.mrb[0].mxu0 %v486
        %v707 = vpop.f32.mrb[0].mxu0
        %v708 = vadd.f32 0.0, %v707
        %v709 = vpop.f32.mrb[0].mxu0
        %v710 = vpop.f32.mrb[0].mxu0
        %v711 = vadd.f32 0.0, %v710
        %v712 = vpop.f32.mrb[0].mxu0
        %713 = vmatprep.mubr.bf16.mxu0 %v604
        %714 = vmatmul.mubr.bf16.gmra.mrb[0].mxu0 %v488
        %v715 = vpop.f32.mrb[0].mxu0
        %v716 = vadd.f32 0.0, %v715
        %v717 = vpop.f32.mrb[0].mxu0
        %v718 = vpop.f32.mrb[0].mxu0
        %v719 = vadd.f32 0.0, %v718
        %v720 = vpop.f32.mrb[0].mxu0
        %721 = vmatprep.mubr.bf16.mxu0 %v607
        %722 = vmatmul.mubr.bf16.gmra.mrb[0].mxu0 %v490
        %v723 = vpop.f32.mrb[0].mxu0
        %v724 = vadd.f32 0.0, %v723
        %v725 = vpop.f32.mrb[0].mxu0
        %v726 = vpop.f32.mrb[0].mxu0
        %v727 = vadd.f32 0.0, %v726
        %v728 = vpop.f32.mrb[0].mxu0
        %729 = vmatprep.mubr.bf16.mxu0 %v610
        %730 = vmatmul.mubr.bf16.gmra.mrb[0].mxu0 %v492
        %v731 = vpop.f32.mrb[0].mxu0
        %v732 = vadd.f32 0.0, %v731
        %v733 = vpop.f32.mrb[0].mxu0
        %v734 = vpop.f32.mrb[0].mxu0
        %v735 = vadd.f32 0.0, %v734
        %v736 = vpop.f32.mrb[0].mxu0
        %737 = vmatprep.mubr.bf16.mxu0 %v613
        %738 = vmatmul.mubr.bf16.gmra.mrb[0].mxu0 %v494
        %v739 = vpop.f32.mrb[0].mxu0
        %v740 = vadd.f32 0.0, %v739
        %v741 = vpop.f32.mrb[0].mxu0
        %v742 = vpop.f32.mrb[0].mxu0
        %v743 = vadd.f32 0.0, %v742
        %v744 = vpop.f32.mrb[0].mxu0
        %745 = vmatprep.mubr.bf16.mxu0 %v616
        %746 = vmatmul.mubr.bf16.gmra.mrb[0].mxu0 %v496
        %v747 = vpop.f32.mrb[0].mxu0
        %v748 = vadd.f32 0.0, %v747
        %v749 = vpop.f32.mrb[0].mxu0
        %v750 = vpop.f32.mrb[0].mxu0
        %v751 = vadd.f32 0.0, %v750
        %v752 = vpop.f32.mrb[0].mxu0
        %753 = vmatprep.mubr.bf16.mxu0 %v619
        %754 = vmatmul.mubr.bf16.gmra.mrb[0].mxu0 %v498
        %v755 = vpop.f32.mrb[0].mxu0
        %v756 = vadd.f32 0.0, %v755
        %v757 = vpop.f32.mrb[0].mxu0
        %v758 = vpop.f32.mrb[0].mxu0
        %v759 = vadd.f32 0.0, %v758
        %v760 = vpop.f32.mrb[0].mxu0
        %761 = vmatprep.mubr.bf16.mxu0 %v622
        %762 = vmatmul.mubr.bf16.gmra.mrb[0].mxu0 %v500
        %v763 = vpop.f32.mrb[0].mxu0
        %v764 = vadd.f32 0.0, %v763
        %v765 = vpop.f32.mrb[0].mxu0
        %v766 = vpop.f32.mrb[0].mxu0
        %v767 = vadd.f32 0.0, %v766
        %v768 = vpop.f32.mrb[0].mxu0
        %769 = vmatprep.mubr.bf16.mxu0 %v625
        %770 = vmatmul.mubr.bf16.gmra.mrb[0].mxu0 %v502
        %v771 = vpop.f32.mrb[0].mxu0
        %v772 = vadd.f32 0.0, %v771
        %v773 = vpop.f32.mrb[0].mxu0
        %v774 = vpop.f32.mrb[0].mxu0
        %v775 = vadd.f32 0.0, %v774
        %v776 = vpop.f32.mrb[0].mxu0
        %777 = vmatprep.mubr.bf16.mxu0 %v628
        %778 = vmatmul.mubr.bf16.gmra.mrb[0].mxu0 %v504
        %v779 = vpop.f32.mrb[0].mxu0
        %v780 = vadd.f32 0.0, %v779
        %v781 = vpop.f32.mrb[0].mxu0
        %v782 = vpop.f32.mrb[0].mxu0
        %v783 = vadd.f32 0.0, %v782
        %v784 = vpop.f32.mrb[0].mxu0
        %785 = vmatprep.mubr.bf16.mxu0 %v631
        %786 = vmatmul.mubr.bf16.gmra.mrb[0].mxu0 %v506
        %v787 = vpop.f32.mrb[0].mxu0
        %v788 = vadd.f32 0.0, %v787
        %v789 = vpop.f32.mrb[0].mxu0
        %v790 = vpop.f32.mrb[0].mxu0
        %v791 = vadd.f32 0.0, %v790
        %v792 = vpop.f32.mrb[0].mxu0
        %793 = vdwg.mxu0
        %v794 = vadd.f32 %v296, %v668
        %v795 = vadd.f32 %v297, %v671
        %v796 = vadd.f32 %v298, %v676
        %v797 = vadd.f32 %v299, %v679
        %v798 = vadd.f32 %v300, %v684
        %v799 = vadd.f32 %v301, %v687
        %v800 = vadd.f32 %v302, %v692
        %v801 = vadd.f32 %v303, %v695
        %v802 = vadd.f32 %v304, %v700
        %v803 = vadd.f32 %v305, %v703
        %v804 = vadd.f32 %v306, %v708
        %v805 = vadd.f32 %v307, %v711
        %v806 = vadd.f32 %v308, %v716
        %v807 = vadd.f32 %v309, %v719
        %v808 = vadd.f32 %v310, %v724
        %v809 = vadd.f32 %v311, %v727
        %v810 = vadd.f32 %v312, %v732
        %v811 = vadd.f32 %v313, %v735
        %v812 = vadd.f32 %v314, %v740
        %v813 = vadd.f32 %v315, %v743
        %v814 = vadd.f32 %v316, %v748
        %v815 = vadd.f32 %v317, %v751
        %v816 = vadd.f32 %v318, %v756
        %v817 = vadd.f32 %v319, %v759
        %v818 = vadd.f32 %v320, %v764
        %v819 = vadd.f32 %v321, %v767
        %v820 = vadd.f32 %v322, %v772
        %v821 = vadd.f32 %v323, %v775
        %v822 = vadd.f32 %v324, %v780
        %v823 = vadd.f32 %v325, %v783
        %v824 = vadd.f32 %v326, %v788
        %v825 = vadd.f32 %v327, %v791
        %826 = vst [vmem:[#allocation2] sm:$0xff] %v794
        %827 = vst [vmem:[#allocation2 + $0x8] sm:$0xff] %v795
        %828 = vst [vmem:[#allocation2 + $0x10] sm:$0xff] %v796
        %829 = vst [vmem:[#allocation2 + $0x18] sm:$0xff] %v797
        %830 = vst [vmem:[#allocation2 + $0x20] sm:$0xff] %v798
        %831 = vst [vmem:[#allocation2 + $0x28] sm:$0xff] %v799
        %832 = vst [vmem:[#allocation2 + $0x30] sm:$0xff] %v800
        %833 = vst [vmem:[#allocation2 + $0x38] sm:$0xff] %v801
        %834 = vst [vmem:[#allocation2 + $0x40] sm:$0xff] %v802
        %835 = vst [vmem:[#allocation2 + $0x48] sm:$0xff] %v803
        %836 = vst [vmem:[#allocation2 + $0x50] sm:$0xff] %v804
        %837 = vst [vmem:[#allocation2 + $0x58] sm:$0xff] %v805
        %838 = vst [vmem:[#allocation2 + $0x60] sm:$0xff] %v806
        %839 = vst [vmem:[#allocation2 + $0x68] sm:$0xff] %v807
        %840 = vst [vmem:[#allocation2 + $0x70] sm:$0xff] %v808
        %841 = vst [vmem:[#allocation2 + $0x78] sm:$0xff] %v809
        %842 = vst [vmem:[#allocation2 + $0x80] sm:$0xff] %v810
        %843 = vst [vmem:[#allocation2 + $0x88] sm:$0xff] %v811
        %844 = vst [vmem:[#allocation2 + $0x90] sm:$0xff] %v812
        %845 = vst [vmem:[#allocation2 + $0x98] sm:$0xff] %v813
        %846 = vst [vmem:[#allocation2 + $0xa0] sm:$0xff] %v814
        %847 = vst [vmem:[#allocation2 + $0xa8] sm:$0xff] %v815
        %848 = vst [vmem:[#allocation2 + $0xb0] sm:$0xff] %v816
        %849 = vst [vmem:[#allocation2 + $0xb8] sm:$0xff] %v817
        %850 = vst [vmem:[#allocation2 + $0xc0] sm:$0xff] %v818
        %851 = vst [vmem:[#allocation2 + $0xc8] sm:$0xff] %v819
        %852 = vst [vmem:[#allocation2 + $0xd0] sm:$0xff] %v820
        %853 = vst [vmem:[#allocation2 + $0xd8] sm:$0xff] %v821
        %854 = vst [vmem:[#allocation2 + $0xe0] sm:$0xff] %v822
        %855 = vst [vmem:[#allocation2 + $0xe8] sm:$0xff] %v823
        %856 = vst [vmem:[#allocation2 + $0xf0] sm:$0xff] %v824
        %857 = vst [vmem:[#allocation2 + $0xf8] sm:$0xff] %v825
        // Predicated region
        $region37: #{tpu_custom_call.1} parent=31 // pred_check
          %p858 = pneg %p260
        $region38: #{tpu_custom_call.1} parent=31 // pred_check_branch
          %860 = sbr.rel (%p858) target = $region40
        $region39: #{tpu_custom_call.1} parent=31 // pred_region
          %v861 = vld [vmem:[#allocation2] sm:$0xff]
          %v862 = vld [vmem:[#allocation2 + $0x8] sm:$0xff]
          %v863 = vld [vmem:[#allocation2 + $0x10] sm:$0xff]
          %v864 = vld [vmem:[#allocation2 + $0x18] sm:$0xff]
          %v865 = vld [vmem:[#allocation2 + $0x20] sm:$0xff]
          %v866 = vld [vmem:[#allocation2 + $0x28] sm:$0xff]
          %v867 = vld [vmem:[#allocation2 + $0x30] sm:$0xff]
          %v868 = vld [vmem:[#allocation2 + $0x38] sm:$0xff]
          %v869 = vld [vmem:[#allocation2 + $0x40] sm:$0xff]
          %v870 = vld [vmem:[#allocation2 + $0x48] sm:$0xff]
          %v871 = vld [vmem:[#allocation2 + $0x50] sm:$0xff]
          %v872 = vld [vmem:[#allocation2 + $0x58] sm:$0xff]
          %v873 = vld [vmem:[#allocation2 + $0x60] sm:$0xff]
          %v874 = vld [vmem:[#allocation2 + $0x68] sm:$0xff]
          %v875 = vld [vmem:[#allocation2 + $0x70] sm:$0xff]
          %v876 = vld [vmem:[#allocation2 + $0x78] sm:$0xff]
          %v877 = vld [vmem:[#allocation2 + $0x80] sm:$0xff]
          %v878 = vld [vmem:[#allocation2 + $0x88] sm:$0xff]
          %v879 = vld [vmem:[#allocation2 + $0x90] sm:$0xff]
          %v880 = vld [vmem:[#allocation2 + $0x98] sm:$0xff]
          %v881 = vld [vmem:[#allocation2 + $0xa0] sm:$0xff]
          %v882 = vld [vmem:[#allocation2 + $0xa8] sm:$0xff]
          %v883 = vld [vmem:[#allocation2 + $0xb0] sm:$0xff]
          %v884 = vld [vmem:[#allocation2 + $0xb8] sm:$0xff]
          %v885 = vld [vmem:[#allocation2 + $0xc0] sm:$0xff]
          %v886 = vld [vmem:[#allocation2 + $0xc8] sm:$0xff]
          %v887 = vld [vmem:[#allocation2 + $0xd0] sm:$0xff]
          %v888 = vld [vmem:[#allocation2 + $0xd8] sm:$0xff]
          %v889 = vld [vmem:[#allocation2 + $0xe0] sm:$0xff]
          %v890 = vld [vmem:[#allocation2 + $0xe8] sm:$0xff]
          %v891 = vld [vmem:[#allocation2 + $0xf0] sm:$0xff]
          %v892 = vld [vmem:[#allocation2 + $0xf8] sm:$0xff]
          %v893 = vld [vmem:[%s257] sm:$0x1]
          %v895 = vlaneseq
          %v896 = vshrl.u32 %v895, 7
          %v897 = vsub.s32 0, %v896
          %v898 = vrot.slane %v893, %v897
          %v900 = vadd.f32 %v861, %v898
          %v901 = vadd.f32 %v862, %v898
          %v902 = vadd.f32 %v863, %v898
          %v903 = vadd.f32 %v864, %v898
          %v904 = vadd.f32 %v865, %v898
          %v905 = vadd.f32 %v866, %v898
          %v906 = vadd.f32 %v867, %v898
          %v907 = vadd.f32 %v868, %v898
          %v908 = vadd.f32 %v869, %v898
          %v909 = vadd.f32 %v870, %v898
          %v910 = vadd.f32 %v871, %v898
          %v911 = vadd.f32 %v872, %v898
          %v912 = vadd.f32 %v873, %v898
          %v913 = vadd.f32 %v874, %v898
          %v914 = vadd.f32 %v875, %v898
          %v915 = vadd.f32 %v876, %v898
          %v916 = vadd.f32 %v877, %v898
          %v917 = vadd.f32 %v878, %v898
          %v918 = vadd.f32 %v879, %v898
          %v919 = vadd.f32 %v880, %v898
          %v920 = vadd.f32 %v881, %v898
          %v921 = vadd.f32 %v882, %v898
          %v922 = vadd.f32 %v883, %v898
          %v923 = vadd.f32 %v884, %v898
          %v924 = vadd.f32 %v885, %v898
          %v925 = vadd.f32 %v886, %v898
          %v926 = vadd.f32 %v887, %v898
          %v927 = vadd.f32 %v888, %v898
          %v928 = vadd.f32 %v889, %v898
          %v929 = vadd.f32 %v890, %v898
          %v930 = vadd.f32 %v891, %v898
          %v931 = vadd.f32 %v892, %v898
          %v932 = vmax.f32 %v900, 0.0
          %v933 = vmax.f32 %v901, 0.0
          %v934 = vmax.f32 %v902, 0.0
          %v935 = vmax.f32 %v903, 0.0
          %v936 = vmax.f32 %v904, 0.0
          %v937 = vmax.f32 %v905, 0.0
          %v938 = vmax.f32 %v906, 0.0
          %v939 = vmax.f32 %v907, 0.0
          %v940 = vmax.f32 %v908, 0.0
          %v941 = vmax.f32 %v909, 0.0
          %v942 = vmax.f32 %v910, 0.0
          %v943 = vmax.f32 %v911, 0.0
          %v944 = vmax.f32 %v912, 0.0
          %v945 = vmax.f32 %v913, 0.0
          %v946 = vmax.f32 %v914, 0.0
          %v947 = vmax.f32 %v915, 0.0
          %v948 = vmax.f32 %v916, 0.0
          %v949 = vmax.f32 %v917, 0.0
          %v950 = vmax.f32 %v918, 0.0
          %v951 = vmax.f32 %v919, 0.0
          %v952 = vmax.f32 %v920, 0.0
          %v953 = vmax.f32 %v921, 0.0
          %v954 = vmax.f32 %v922, 0.0
          %v955 = vmax.f32 %v923, 0.0
          %v956 = vmax.f32 %v924, 0.0
          %v957 = vmax.f32 %v925, 0.0
          %v958 = vmax.f32 %v926, 0.0
          %v959 = vmax.f32 %v927, 0.0
          %v960 = vmax.f32 %v928, 0.0
          %v961 = vmax.f32 %v929, 0.0
          %v962 = vmax.f32 %v930, 0.0
          %v963 = vmax.f32 %v931, 0.0
          %v964 = vpack.c.bf16 %v933, %v932
          %v965 = vpack.c.bf16 %v935, %v934
          %v966 = vpack.c.bf16 %v937, %v936
          %v967 = vpack.c.bf16 %v939, %v938
          %v968 = vpack.c.bf16 %v941, %v940
          %v969 = vpack.c.bf16 %v943, %v942
          %v970 = vpack.c.bf16 %v945, %v944
          %v971 = vpack.c.bf16 %v947, %v946
          %v972 = vpack.c.bf16 %v949, %v948
          %v973 = vpack.c.bf16 %v951, %v950
          %v974 = vpack.c.bf16 %v953, %v952
          %v975 = vpack.c.bf16 %v955, %v954
          %v976 = vpack.c.bf16 %v957, %v956
          %v977 = vpack.c.bf16 %v959, %v958
          %v978 = vpack.c.bf16 %v961, %v960
          %v979 = vpack.c.bf16 %v963, %v962
          %v996 = vunpack.c.l.b16 %v964
          %v997 = vunpack.c.h.b16 %v964
          %v998 = vunpack.c.l.b16 %v965
          %v999 = vunpack.c.h.b16 %v965
          %v1000 = vunpack.c.l.b16 %v966
          %v1001 = vunpack.c.h.b16 %v966
          %v1002 = vunpack.c.l.b16 %v967
          %v1003 = vunpack.c.h.b16 %v967
          %v1004 = vunpack.c.l.b16 %v968
          %v1005 = vunpack.c.h.b16 %v968
          %v1006 = vunpack.c.l.b16 %v969
          %v1007 = vunpack.c.h.b16 %v969
          %v1008 = vunpack.c.l.b16 %v970
          %v1009 = vunpack.c.h.b16 %v970
          %v1010 = vunpack.c.l.b16 %v971
          %v1011 = vunpack.c.h.b16 %v971
          %v1012 = vunpack.c.l.b16 %v972
          %v1013 = vunpack.c.h.b16 %v972
          %v1014 = vunpack.c.l.b16 %v973
          %v1015 = vunpack.c.h.b16 %v973
          %v1016 = vunpack.c.l.b16 %v974
          %v1017 = vunpack.c.h.b16 %v974
          %v1018 = vunpack.c.l.b16 %v975
          %v1019 = vunpack.c.h.b16 %v975
          %v1020 = vunpack.c.l.b16 %v976
          %v1021 = vunpack.c.h.b16 %v976
          %v1022 = vunpack.c.l.b16 %v977
          %v1023 = vunpack.c.h.b16 %v977
          %v1024 = vunpack.c.l.b16 %v978
          %v1025 = vunpack.c.h.b16 %v978
          %v1026 = vunpack.c.l.b16 %v979
          %v1027 = vunpack.c.h.b16 %v979
          %v1028 = vpack.c.b16 %v996, %v996
          %v1029 = vpack.c.b16 %v997, %v997
          %v1030 = vpack.c.b16 %v998, %v998
          %v1031 = vpack.c.b16 %v999, %v999
          %v1032 = vpack.c.b16 %v1000, %v1000
          %v1033 = vpack.c.b16 %v1001, %v1001
          %v1034 = vpack.c.b16 %v1002, %v1002
          %v1035 = vpack.c.b16 %v1003, %v1003
          %v1036 = vpack.c.b16 %v1004, %v1004
          %v1037 = vpack.c.b16 %v1005, %v1005
          %v1038 = vpack.c.b16 %v1006, %v1006
          %v1039 = vpack.c.b16 %v1007, %v1007
          %v1040 = vpack.c.b16 %v1008, %v1008
          %v1041 = vpack.c.b16 %v1009, %v1009
          %v1042 = vpack.c.b16 %v1010, %v1010
          %v1043 = vpack.c.b16 %v1011, %v1011
          %v1044 = vpack.c.b16 %v1012, %v1012
          %v1045 = vpack.c.b16 %v1013, %v1013
          %v1046 = vpack.c.b16 %v1014, %v1014
          %v1047 = vpack.c.b16 %v1015, %v1015
          %v1048 = vpack.c.b16 %v1016, %v1016
          %v1049 = vpack.c.b16 %v1017, %v1017
          %v1050 = vpack.c.b16 %v1018, %v1018
          %v1051 = vpack.c.b16 %v1019, %v1019
          %v1052 = vpack.c.b16 %v1020, %v1020
          %v1053 = vpack.c.b16 %v1021, %v1021
          %v1054 = vpack.c.b16 %v1022, %v1022
          %v1055 = vpack.c.b16 %v1023, %v1023
          %v1056 = vpack.c.b16 %v1024, %v1024
          %v1057 = vpack.c.b16 %v1025, %v1025
          %v1058 = vpack.c.b16 %v1026, %v1026
          %v1059 = vpack.c.b16 %v1027, %v1027
          %1092 = vst [vmem:[%s233] sm:$0xf] %v1028
          %1093 = vst [vmem:[%s233 + $0x4] sm:$0xf] %v1029
          %1094 = vst [vmem:[%s233 + $0x8] sm:$0xf] %v1030
          %1095 = vst [vmem:[%s233 + $0xc] sm:$0xf] %v1031
          %1096 = vst [vmem:[%s233 + $0x10] sm:$0xf] %v1032
          %1097 = vst [vmem:[%s233 + $0x14] sm:$0xf] %v1033
          %1098 = vst [vmem:[%s233 + $0x18] sm:$0xf] %v1034
          %1099 = vst [vmem:[%s233 + $0x1c] sm:$0xf] %v1035
          %1100 = vst [vmem:[%s233 + $0x20] sm:$0xf] %v1036
          %1101 = vst [vmem:[%s233 + $0x24] sm:$0xf] %v1037
          %1102 = vst [vmem:[%s233 + $0x28] sm:$0xf] %v1038
          %1103 = vst [vmem:[%s233 + $0x2c] sm:$0xf] %v1039
          %1104 = vst [vmem:[%s233 + $0x30] sm:$0xf] %v1040
          %1105 = vst [vmem:[%s233 + $0x34] sm:$0xf] %v1041
          %1106 = vst [vmem:[%s233 + $0x38] sm:$0xf] %v1042
          %1107 = vst [vmem:[%s233 + $0x3c] sm:$0xf] %v1043
          %1108 = vst [vmem:[%s233 + $0x40] sm:$0xf] %v1044
          %1109 = vst [vmem:[%s233 + $0x44] sm:$0xf] %v1045
          %1110 = vst [vmem:[%s233 + $0x48] sm:$0xf] %v1046
          %1111 = vst [vmem:[%s233 + $0x4c] sm:$0xf] %v1047
          %1112 = vst [vmem:[%s233 + $0x50] sm:$0xf] %v1048
          %1113 = vst [vmem:[%s233 + $0x54] sm:$0xf] %v1049
          %1114 = vst [vmem:[%s233 + $0x58] sm:$0xf] %v1050
          %1115 = vst [vmem:[%s233 + $0x5c] sm:$0xf] %v1051
          %1116 = vst [vmem:[%s233 + $0x60] sm:$0xf] %v1052
          %1117 = vst [vmem:[%s233 + $0x64] sm:$0xf] %v1053
          %1118 = vst [vmem:[%s233 + $0x68] sm:$0xf] %v1054
          %1119 = vst [vmem:[%s233 + $0x6c] sm:$0xf] %v1055
          %1120 = vst [vmem:[%s233 + $0x70] sm:$0xf] %v1056
          %1121 = vst [vmem:[%s233 + $0x74] sm:$0xf] %v1057
          %1122 = vst [vmem:[%s233 + $0x78] sm:$0xf] %v1058
          %1123 = vst [vmem:[%s233 + $0x7c] sm:$0xf] %v1059
        $region40: #{tpu_custom_call.1} parent=31 // pred_fallthru
          _
        %s1124 = sand.u32 %s128, 1
        %s1125 = scalar_lea.sflag [#allocation4], %s1124
        %s1126 = sand.u32 %s128, 1
        %s1127 = smul.addr %s1126, 128
        %s1128 = scalar_lea.vmem [#allocation3], %s1127
        // Predicated region
        $region41: #{tpu_custom_call.1} parent=31 // pred_check
          %p1129 = pneg %p138
        $region42: #{tpu_custom_call.1} parent=31 // pred_check_branch
          %1131 = sbr.rel (%p1129) target = $region44
        $region43: #{tpu_custom_call.1} parent=31 // pred_region
          %s1132 = smul.u32 32, %s22
          %s1134 = ssub.s32 2048, 2048
          %1135 = vsyncadd %s1125, %s1134
          %s1136 = sadd.s32 %s23, %s1132
          %s1137 = smul.addr %s1136, 64
          %s1138 = scalar_lea.hbm %s3, %s1137
          %s1139 = sshll.u32 %s1128, 4
          %s1140 = int_to_ptr.vmem [resolvable:$true] %s1139
          %1145 = dma.vmem_to_hbm [thread:$0]  %s1140, 2048, %s1138, %s1125, 64, 64, 4
        $region44: #{tpu_custom_call.1} parent=31 // pred_fallthru
          _
      $region32: #{tpu_custom_call.1} parent=5 // pred_fallthru
        _
      %p1146 = scmp.le.s32.totalorder 2, %s12
      // Predicated region
      $region45: #{tpu_custom_call.1} parent=5 // pred_check
        %p1147 = pneg %p1146
      $region46: #{tpu_custom_call.1} parent=5 // pred_check_branch
        %1149 = sbr.rel (%p1147) target = $region48
      $region47: #{tpu_custom_call.1} parent=5 // pred_region
        %s1150 = ssub.s32 %s12, 2
        // Predicated region
        $region49: #{tpu_custom_call.1} parent=47 // pred_check
          %p1151 = pneg %p144
        $region50: #{tpu_custom_call.1} parent=47 // pred_check_branch
          %1153 = sbr.rel (%p1151) target = $region52
        $region51: #{tpu_custom_call.1} parent=47 // pred_region
          %s1154 = sand.u32 %s129, 1
          %s1155 = scalar_lea.sflag [#allocation4], %s1154
          %s1156 = sand.u32 %s129, 1
          %s1157 = smul.addr %s1156, 128
          %s1158 = scalar_lea.vmem [#allocation3], %s1157
          %1159 = dma.done %s1155, 2048
        $region52: #{tpu_custom_call.1} parent=47 // pred_fallthru
          _
      $region48: #{tpu_custom_call.1} parent=5 // pred_fallthru
        _
    $region6: #{tpu_custom_call.1} parent=1 // loop_footer
      %s16 = sadd.s32 1, %s12
    $region7: #{tpu_custom_call.1} parent=1 // loop_footer_branch
      %11 = sbr.rel target = $region3
    $region8: #{tpu_custom_call.1} parent=1 // loop_exit
      _
    %1160 = vsyncpa [#allocation4], 1
    %s1161 = scalar_lea.sflag [#allocation4], 1
    %1162 = vsyncpa %s1161, 1

</llo_original>
